<compile_context>
chip_gen: v7x
topology: tpu7x:2x2x1
jax: 0.10.0
libtpu: 0.0.40
codegen_flags: <defaults>
</compile_context>

<pallas_src>
import numpy as np
import jax
import jax.numpy as jnp
from jax.experimental import pallas as pl
from jax.experimental.pallas import tpu as pltpu


# --------------------------- static (numpy) setup ----------------------------

def _gaussian_taps_1d(ksize: int, sigma: float) -> np.ndarray:
    """Matches kornia.filters.kernels.gaussian (already sums to 1)."""
    x = np.arange(ksize, dtype=np.float64) - ksize // 2
    if ksize % 2 == 0:
        x = x + 0.5
    g = np.exp(-(x ** 2) / (2.0 * sigma ** 2))
    return g / g.sum()


def _blur_band_matrix(out_len: int, in_len: int, taps: np.ndarray) -> np.ndarray:
    """M[o, i] = taps[i - o] for 0 <= i - o < len(taps); 'valid' conv as matmul."""
    k = taps.shape[0]
    m = np.zeros((out_len, in_len), dtype=np.float64)
    for o in range(out_len):
        m[o, o:o + k] = taps
    return m


def _reflect_pad_matrix(n: int, pad: int) -> np.ndarray:
    """(n + 2*pad, n) selector implementing PyTorch/NumPy 'reflect' padding."""
    assert pad < n, f"reflect padding requires pad ({pad}) < dim ({n})"
    idx = np.arange(-pad, n + pad)
    idx = np.where(idx < 0, -idx, idx)
    idx = np.where(idx >= n, 2 * (n - 1) - idx, idx)
    m = np.zeros((n + 2 * pad, n), dtype=np.float64)
    m[np.arange(n + 2 * pad), idx] = 1.0
    return m


def _nearest_upsample_matrix(out_len: int, in_len: int) -> np.ndarray:
    """(out_len, in_len) selector matching F.interpolate(mode='nearest')."""
    src = (np.arange(out_len) * in_len) // out_len
    m = np.zeros((out_len, in_len), dtype=np.float64)
    m[np.arange(out_len), src] = 1.0
    return m


def _device_vmem_limit_bytes() -> int:
    """Per-call scoped-VMEM limit derived from the device (conservative fallback)."""
    phys = 64 << 20                      # v7x per-TensorCore physical VMEM
    try:
        info = pltpu.get_tpu_info()
        phys = int(getattr(info, "vmem_capacity_bytes", phys))
    except Exception:
        pass
    return int(min(phys * 3 // 4, 100 << 20))


# ------------------------------- Pallas kernel --------------------------------

def _blur_kernel(a_ref, f_ref, bt_ref, o_ref):
    # a:  (H, Frp)        shared row-transform matrix
    # f:  (blk, Frp, Fc)  raw feature-map block
    # bt: (Fc, W)         shared (transposed) column-transform matrix
    # o:  (blk, 1, H, W)  output block (NCHW)
    blk, frp, fc = f_ref.shape
    w = bt_ref.shape[1]

    # Column transform first: one lane-dense 2-D MXU dot (output last dim = W).
    t = jnp.dot(f_ref[...].reshape(blk * frp, fc), bt_ref[...],
                preferred_element_type=jnp.float32)          # (blk*Frp, W) f32
    t = t.astype(a_ref.dtype).reshape(blk, frp, w)

    a = a_ref[...]                                            # (H, Frp)
    # Row transform per batch element, written straight to its output slice.
    # blk is small and static -> plain unrolled Python loop, static indices.
    for b in range(blk):
        o_ref[b, 0] = jnp.dot(a, t[b],
                              preferred_element_type=jnp.float32
                              ).astype(o_ref.dtype)


def _blur_upsample_pallas(fmaps: jnp.ndarray, a_fold: jnp.ndarray,
                          bt_fold: jnp.ndarray, blk: int, batch: int,
                          out_dtype, vmem_limit: int) -> jnp.ndarray:
    _, frp, fc = fmaps.shape
    h = a_fold.shape[0]
    w = bt_fold.shape[1]
    grid = (pl.cdiv(batch, blk),)

    flops = int(2 * grid[0] * blk * (frp * fc * w + h * frp * w))
    bytes_accessed = int(fmaps.nbytes + a_fold.nbytes + bt_fold.nbytes
                         + batch * h * w * np.dtype(out_dtype).itemsize)

    return pl.pallas_call(
        _blur_kernel,
        out_shape=jax.ShapeDtypeStruct((batch, 1, h, w), out_dtype),
        grid=grid,
        in_specs=[
            pl.BlockSpec((h, frp), lambda i: (0, 0)),           # A_fold  (shared)
            pl.BlockSpec((blk, frp, fc), lambda i: (i, 0, 0)),  # feature maps
            pl.BlockSpec((fc, w), lambda i: (0, 0)),            # Bt_fold (shared)
        ],
        out_specs=pl.BlockSpec((blk, 1, h, w), lambda i: (i, 0, 0, 0)),
        compiler_params=pltpu.CompilerParams(
            dimension_semantics=("parallel",),
            vmem_limit_bytes=int(vmem_limit)),
        cost_estimate=pl.CostEstimate(flops=flops, transcendentals=0,
                                      bytes_accessed=bytes_accessed),
    )(a_fold, fmaps, bt_fold)


# ------------------------------ module wrapper --------------------------------

class AnomalyMapGeneratorPallas:
    """JAX/Pallas port of AnomalyMapGenerator (forward returns (anomaly_map, None))."""

    def __init__(self, input_size, sigma: int = 4,
                 compute_dtype=jnp.float32, output_dtype=jnp.float32):
        self.input_size = tuple(int(s) for s in input_size)
        self.sigma = float(sigma)
        self.compute_dtype = compute_dtype
        self.output_dtype = output_dtype
        ksize = 2 * int(4.0 * sigma + 0.5) + 1            # = 33 for sigma=4
        self.ksize = ksize
        self.pad = (ksize - 1) // 2                       # kornia _compute_padding (odd k)
        if min(self.input_size) <= self.pad:
            raise ValueError(
                f"input_size {self.input_size} must exceed reflect pad {self.pad}")

        k1 = _gaussian_taps_1d(ksize, float(sigma))
        # kornia's normalize_kernel2d divides the (already ~normalized) outer
        # product by its sum; keep this "double" normalization to match kornia
        # numerics exactly.  outer(row_taps, col_taps) == normalized 2-D kernel.
        k2d_sum = np.outer(k1, k1).sum()
        self._row_taps = k1 / k2d_sum
        self._col_taps = k1
        # Sublane pack for the compute dtype (8 for f32, 16 for bf16).
        self._sub = 8 * (4 // np.dtype(self.compute_dtype).itemsize)
        self._vmem_limit = _device_vmem_limit_bytes()
        self._mat_cache = {}                              # (Fr, Fc) -> (A, Bt, Frp)

    # ---- folded (blur @ reflect-pad @ nearest-upsample) matrices, cached ----
    def _folded_matrices(self, fr: int, fc: int):
        key = (fr, fc)
        if key not in self._mat_cache:
            h, w = self.input_size
            p = self.pad
            a_fold = (_blur_band_matrix(h, h + 2 * p, self._row_taps)
                      @ _reflect_pad_matrix(h, p)
                      @ _nearest_upsample_matrix(h, fr))            # (H, Fr)
            b_fold = (_blur_band_matrix(w, w + 2 * p, self._col_taps)
                      @ _reflect_pad_matrix(w, p)
                      @ _nearest_upsample_matrix(w, fc))            # (W, Fc)
            # Pad Fr to the sublane pack so in-kernel reshape / per-batch
            # slices stay tile-aligned (extra A columns are zero -> no effect).
            frp = ((fr + self._sub - 1) // self._sub) * self._sub
            a_pad = np.zeros((h, frp), dtype=np.float64)
            a_pad[:, :fr] = a_fold
            self._mat_cache[key] = (
                jnp.asarray(a_pad, dtype=self.compute_dtype),       # (H, Frp)
                jnp.asarray(b_fold.T, dtype=self.compute_dtype),    # (Fc, W)
                frp,
            )
        return self._mat_cache[key]

    def _pick_batch_block(self, batch: int, frp: int, fc: int,
                          h: int, w: int) -> int:
        in_b = np.dtype(self.compute_dtype).itemsize
        out_b = np.dtype(self.output_dtype).itemsize
        per_elem = (2 * frp * fc * in_b          # double-buffered input block
                    + 2 * h * w * out_b          # double-buffered output block
                    + frp * w * 4                # f32 column-transform temp
                    + frp * w * in_b)            # cast copy fed to row transform
        fixed = (2 * (h * frp + fc * w) * in_b   # shared matrices (2x buffered)
                 + 2 * h * w * 4                 # per-batch dot result headroom
                 + (2 << 20))                    # Mosaic internal scratch slack
        budget = max(per_elem, self._vmem_limit - fixed)
        blk = int(max(1, min(batch, budget // per_elem, 32)))
        if batch >= 2:
            blk = min(blk, -(-batch // 2))       # >= 2 grid steps (v7x megacore)
        return max(1, int(blk))

    def compute_anomaly_map(self, patch_scores: jnp.ndarray, feature_map_shape):
        fr, fc = int(feature_map_shape[0]), int(feature_map_shape[1])
        batch = patch_scores.shape[0] // (fr * fc)
        h, w = self.input_size

        a_fold, bt_fold, frp = self._folded_matrices(fr, fc)

        # Column-select + reshape (+ optional tiny Fr pad) is the only XLA glue;
        # everything else runs inside the Pallas kernel, which writes the exact
        # (B, 1, H, W) output (no post-kernel slice / copy).
        fmaps = patch_scores[:, 0].reshape(batch, fr, fc).astype(self.compute_dtype)
        if frp != fr:
            fmaps = jnp.pad(fmaps, ((0, 0), (0, frp - fr), (0, 0)))

        blk = self._pick_batch_block(batch, frp, fc, h, w)
        return _blur_upsample_pallas(fmaps, a_fold, bt_fold, blk, batch,
                                     self.output_dtype, self._vmem_limit)

    def __call__(self, **kwargs):
        if "patch_scores" not in kwargs:
            raise ValueError(f"Expected key `patch_scores`. Found {kwargs.keys()}")
        if "feature_map_shape" not in kwargs:
            raise ValueError(f"Expected key `feature_map_shape`. Found {kwargs.keys()}")
        anomaly_map = self.compute_anomaly_map(kwargs["patch_scores"],
                                               kwargs["feature_map_shape"])
        return anomaly_map, None


# ------------------------- f64 reference (validation) -------------------------

def _reference_anomaly_map_np(patch_scores: np.ndarray, feature_map_shape,
                              input_size, sigma: int) -> np.ndarray:
    """Literal (non-folded) pipeline: NN upsample -> reflect pad -> blur, f64."""
    ps = np.asarray(patch_scores, dtype=np.float64)
    fr, fc = int(feature_map_shape[0]), int(feature_map_shape[1])
    b = ps.shape[0] // (fr * fc)
    fmap = ps[:, 0].reshape(b, fr, fc)
    h, w = int(input_size[0]), int(input_size[1])
    idx_r = (np.arange(h) * fr) // h
    idx_c = (np.arange(w) * fc) // w
    up = fmap[:, idx_r][:, :, idx_c]
    ksize = 2 * int(4.0 * sigma + 0.5) + 1
    pad = (ksize - 1) // 2
    xp = np.pad(up, ((0, 0), (pad, pad), (pad, pad)), mode="reflect")
    k1 = _gaussian_taps_1d(ksize, float(sigma))
    s = np.outer(k1, k1).sum()
    a = _blur_band_matrix(h, h + 2 * pad, k1 / s)
    bt = _blur_band_matrix(w, w + 2 * pad, k1).T
    out = np.einsum('hp,bpq,qw->bhw', a, xp, bt)
    return out[:, None, :, :]


# ----------------------------------- main -------------------------------------

if __name__ == "__main__":
    key = jax.random.PRNGKey(0)
    # feature map 8x8, batch 2, k-NN scores of width 4 -> patch_scores (128, 4)
    B, Wf, Hf, K = 2, 8, 8, 4
    input_size = (32, 32)   # must exceed reflect pad (=16 for sigma=4)

    patch_scores = jax.random.uniform(key, (B * Wf * Hf, K), dtype=jnp.float32)

    gen = AnomalyMapGeneratorPallas(input_size=input_size, sigma=4)
    anomaly_map, score = gen(patch_scores=patch_scores, feature_map_shape=(Wf, Hf))
    anomaly_map = jax.block_until_ready(anomaly_map)

    assert anomaly_map.shape == (B, 1, input_size[0], input_size[1])
    assert anomaly_map.dtype == jnp.float32
    assert score is None

    # Validate the folded-matrix kernel against the literal f64 reference.
    ref = _reference_anomaly_map_np(np.asarray(patch_scores), (Wf, Hf),
                                    input_size, sigma=4)
    err = float(np.max(np.abs(np.asarray(anomaly_map, dtype=np.float64) - ref)))
    tol = 1e-3 if gen.compute_dtype == jnp.float32 else 3e-2
    assert err < tol, f"max abs error vs reference: {err}"

    print("KERNEL_OK")
</pallas_src>

<mosaic_0001>
module attributes {stable_mosaic.version = 11 : i64} {
  func.func @_blur_kernel(%arg0: i32, %arg1: memref<32x8xf32, #tpu.memory_space<vmem>>, %arg2: memref<1x8x8xf32, #tpu.memory_space<vmem>>, %arg3: memref<8x32xf32, #tpu.memory_space<vmem>>, %arg4: memref<1x1x32x32xf32, #tpu.memory_space<vmem>>) attributes {dimension_semantics = [#tpu.dimension_semantics<parallel>], iteration_bounds = array<i64: 2>, scalar_prefetch = 0 : i64, scratch_operands = 0 : i64, tpu.core_type = #tpu.core_type<tc>, window_params = [{pipeline_mode = #tpu.pipeline_mode<synchronous>, transform_indices = @transform_0, window_bounds = array<i64: 32, 8>}, {transform_indices = @transform_1, window_bounds = array<i64: 1, 8, 8>}, {pipeline_mode = #tpu.pipeline_mode<synchronous>, transform_indices = @transform_2, window_bounds = array<i64: 8, 32>}, {transform_indices = @transform_3, window_bounds = array<i64: 1, 1, 32, 32>}]} {
    %c0 = arith.constant 0 : index
    %c0_0 = arith.constant 0 : index
    %c0_1 = arith.constant 0 : index
    %0 = vector.load %arg2[%c0, %c0_0, %c0_1] : memref<1x8x8xf32, #tpu.memory_space<vmem>>, vector<1x8x8xf32>
    %1 = vector.shape_cast %0 : vector<1x8x8xf32> to vector<8x8xf32>
    %c0_2 = arith.constant 0 : index
    %c0_3 = arith.constant 0 : index
    %2 = vector.load %arg3[%c0_2, %c0_3] : memref<8x32xf32, #tpu.memory_space<vmem>>, vector<8x32xf32>
    %cst = arith.constant dense<0.000000e+00> : vector<8x32xf32>
    %3 = tpu.matmul %1, %2, %cst {dimension_numbers = #tpu.dot_dimension_numbers<[1], [0], [0], [1], [0, 0, 1, 1], [], []>} : vector<8x8xf32>, vector<8x32xf32>, vector<8x32xf32> -> vector<8x32xf32>
    %4 = vector.shape_cast %3 : vector<8x32xf32> to vector<1x8x32xf32>
    %c0_4 = arith.constant 0 : index
    %c0_5 = arith.constant 0 : index
    %5 = vector.load %arg1[%c0_4, %c0_5] : memref<32x8xf32, #tpu.memory_space<vmem>>, vector<32x8xf32>
    %6 = vector.shape_cast %4 : vector<1x8x32xf32> to vector<8x32xf32>
    %cst_6 = arith.constant dense<0.000000e+00> : vector<32x32xf32>
    %7 = tpu.matmul %5, %6, %cst_6 {dimension_numbers = #tpu.dot_dimension_numbers<[1], [0], [0], [1], [0, 0, 1, 1], [], []>} : vector<32x8xf32>, vector<8x32xf32>, vector<32x32xf32> -> vector<32x32xf32>
    %c0_7 = arith.constant 0 : index
    %c0_8 = arith.constant 0 : index
    %c0_9 = arith.constant 0 : index
    %c0_10 = arith.constant 0 : index
    %8 = vector.load %arg4[%c0_7, %c0_8, %c0_9, %c0_10] : memref<1x1x32x32xf32, #tpu.memory_space<vmem>>, vector<1x1x32x32xf32>
    %9 = vector.shape_cast %8 : vector<1x1x32x32xf32> to vector<32x32xf32>
    %10 = vector.shape_cast %7 : vector<32x32xf32> to vector<1x1x32x32xf32>
    tpu.vector_store %arg4[%c0_7, %c0_8, %c0_9, %c0_10], %10 {strides = array<i32>} : memref<1x1x32x32xf32, #tpu.memory_space<vmem>>, vector<1x1x32x32xf32>,
    return
  }
  func.func @transform_0(%arg0: i32) -> (i32, i32) {
    %c0_i32 = arith.constant 0 : i32
    %c0_i32_0 = arith.constant 0 : i32
    %c0_i32_1 = arith.constant 0 : i32
    return %c0_i32, %c0_i32_0 : i32, i32
  }
  func.func @transform_1(%arg0: i32) -> (i32, i32, i32) {
    %c0_i32 = arith.constant 0 : i32
    %c0_i32_0 = arith.constant 0 : i32
    %c0_i32_1 = arith.constant 0 : i32
    return %arg0, %c0_i32, %c0_i32_0 : i32, i32, i32
  }
  func.func @transform_2(%arg0: i32) -> (i32, i32) {
    %c0_i32 = arith.constant 0 : i32
    %c0_i32_0 = arith.constant 0 : i32
    %c0_i32_1 = arith.constant 0 : i32
    return %c0_i32, %c0_i32_0 : i32, i32
  }
  func.func @transform_3(%arg0: i32) -> (i32, i32, i32, i32) {
    %c0_i32 = arith.constant 0 : i32
    %c0_i32_0 = arith.constant 0 : i32
    %c0_i32_1 = arith.constant 0 : i32
    %c0_i32_2 = arith.constant 0 : i32
    return %arg0, %c0_i32, %c0_i32_0, %c0_i32_1 : i32, i32, i32, i32
  }
}

</mosaic_0001>

<llo_original>
// kernel: tpu_custom_call.1
$region0: #{tpu_custom_call.1}
  #allocation0 [shape = 'u32[]', space=smem, size = 0x4, offset = 0x4, fixed_abs, tag = 'smem constant byte address 0x4 - core index']
  #allocation1 [shape = 'u32[144,128]{1,0:T(1,128)}', space=vmem, size = 0x12000, scoped, tag = 'internal scratch']
  %s0 = inlined_call_operand.vmem [shape: f32[32,8], index: 0, kind: input, shape index: {}]
  %s1 = inlined_call_operand.vmem [shape: f32[2,8,8], index: 1, kind: input, shape index: {}]
  %s2 = inlined_call_operand.vmem [shape: f32[8,32], index: 2, kind: input, shape index: {}]
  %s3 = inlined_call_operand.hbm [shape: f32[2,1,32,32], index: 3, kind: output, shape index: {}]
  %s4 = sld [smem:[#allocation0]]
  $region45: #{tpu_custom_call.1} parent=0
    _
  %s6 = ssub.s32 1, %s4
  %s7 = scalar_select 0, %s6, %s4
  $region1: #{tpu_custom_call.1} parent=0
    #allocation2 [shape = 'u8[32768]{0}', space=vmem, size = 0x8000, scoped, tag = 'output window, operand 0']
    #allocation3 [shape = 's32[2]{0}', space=sflag, size = 0x8, scoped, tag = 'scoped memory for tpu_custom_call.1']
    %8 = vsyncpa [#allocation3], 0
    %s9 = scalar_lea.sflag [#allocation3], 1
    %10 = vsyncpa %s9, 0
    loop: start=0, step=1, limit=4
    $region2: #{tpu_custom_call.1} parent=1 // loop_pre_header
      _
    $region3: #{tpu_custom_call.1} parent=1 // loop_header
      %s12 = sphi 0, %s16
      %p13 = scmp.ge.s32.totalorder %s12, 4
      %s20 = sphi 0, %s20
      %s22 = sphi 0, %s20
      %s23 = sphi 0, %s22
      %s37 = sphi 0, %s23
      %s43 = sphi 0, %s45
      %s46 = sphi 0, %s43
      %s47 = sphi 0, %s46
      %s63 = sphi 0, %s47
      %s67 = sphi 0, %s67
      %s69 = sphi 0, %s67
      %s70 = sphi 0, %s69
      %s84 = sphi 0, %s70
      %s90 = sphi 0, %s92
      %s93 = sphi 0, %s90
      %s94 = sphi 0, %s93
      %s110 = sphi 0, %s94
    $region4: #{tpu_custom_call.1} parent=1 // loop_header_branch
      %15 = sbr.rel (%p13) target = $region8
    $region5: #{tpu_custom_call.1} parent=1 // loop_body
      %s17 = ssub.s32 %s12, 1
      %s18 = ssub.s32 %s12, 2
      %s19 = sadd.s32 %s12, 1
      %s21 = sadd.s32 %s20, 1
      %p24 = scmp.eq.s32.totalorder %s12, 1
      %p25 = scmp.ne.s32.totalorder %s20, %s22
      %p26 = scmp.eq.s32.totalorder %s12, 0
      %p27 = por %p25, %p26
      %p28 = scmp.ne.s32.totalorder %s20, %s22
      %p29 = scmp.eq.s32.totalorder %s17, 1
      %p30 = por %p28, %p29
      %p31 = scmp.ne.s32.totalorder %s22, %s23
      %p32 = scmp.eq.s32.totalorder %s17, 0
      %p33 = por %p31, %p32
      %p34 = scmp.ne.s32.totalorder %s22, %s23
      %p35 = scmp.eq.s32.totalorder %s18, 1
      %p36 = por %p34, %p35
      %p38 = scmp.ne.s32.totalorder %s23, %s37
      %p39 = scmp.eq.s32.totalorder %s18, 0
      %p40 = por %p38, %p39
      %s41 = ssub.s32 %s12, %s19
      %p42 = scmp.eq.s32.totalorder %s41, 0
      %s44 = sadd.s32 %s43, 1
      %s45 = scalar_select %p42, %s43, %s44
      %p48 = pneg %p42
      %p49 = scmp.eq.s32.totalorder %s12, 1
      %p50 = por %p48, %p49
      %p51 = scmp.ne.s32.totalorder %s43, %s46
      %p52 = scmp.eq.s32.totalorder %s12, 0
      %p53 = por %p51, %p52
      %p54 = scmp.ne.s32.totalorder %s43, %s46
      %p55 = scmp.eq.s32.totalorder %s17, 1
      %p56 = por %p54, %p55
      %p57 = scmp.ne.s32.totalorder %s46, %s47
      %p58 = scmp.eq.s32.totalorder %s17, 0
      %p59 = por %p57, %p58
      %p60 = scmp.ne.s32.totalorder %s46, %s47
      %p61 = scmp.eq.s32.totalorder %s18, 1
      %p62 = por %p60, %p61
      %p64 = scmp.ne.s32.totalorder %s47, %s63
      %p65 = scmp.eq.s32.totalorder %s18, 0
      %p66 = por %p64, %p65
      %s68 = sadd.s32 %s67, 1
      %p71 = scmp.eq.s32.totalorder %s12, 1
      %p72 = scmp.ne.s32.totalorder %s67, %s69
      %p73 = scmp.eq.s32.totalorder %s12, 0
      %p74 = por %p72, %p73
      %p75 = scmp.ne.s32.totalorder %s67, %s69
      %p76 = scmp.eq.s32.totalorder %s17, 1
      %p77 = por %p75, %p76
      %p78 = scmp.ne.s32.totalorder %s69, %s70
      %p79 = scmp.eq.s32.totalorder %s17, 0
      %p80 = por %p78, %p79
      %p81 = scmp.ne.s32.totalorder %s69, %s70
      %p82 = scmp.eq.s32.totalorder %s18, 1
      %p83 = por %p81, %p82
      %p85 = scmp.ne.s32.totalorder %s70, %s84
      %p86 = scmp.eq.s32.totalorder %s18, 0
      %p87 = por %p85, %p86
      %s88 = ssub.s32 %s12, %s19
      %p89 = scmp.eq.s32.totalorder %s88, 0
      %s91 = sadd.s32 %s90, 1
      %s92 = scalar_select %p89, %s90, %s91
      %p95 = pneg %p89
      %p96 = scmp.eq.s32.totalorder %s12, 1
      %p97 = por %p95, %p96
      %p98 = scmp.ne.s32.totalorder %s90, %s93
      %p99 = scmp.eq.s32.totalorder %s12, 0
      %p100 = por %p98, %p99
      %p101 = scmp.ne.s32.totalorder %s90, %s93
      %p102 = scmp.eq.s32.totalorder %s17, 1
      %p103 = por %p101, %p102
      %p104 = scmp.ne.s32.totalorder %s93, %s94
      %p105 = scmp.eq.s32.totalorder %s17, 0
      %p106 = por %p104, %p105
      %p107 = scmp.ne.s32.totalorder %s93, %s94
      %p108 = scmp.eq.s32.totalorder %s18, 1
      %p109 = por %p107, %p108
      %p111 = scmp.ne.s32.totalorder %s94, %s110
      %p112 = scmp.eq.s32.totalorder %s18, 0
      %p113 = por %p111, %p112
      %p114 = scmp.le.s32.totalorder 1, %s12
      %p115 = scmp.lt.s32.totalorder %s12, 3
      %p116 = pnand %p114, %p115
      %p117 = pneg %p116
      // Predicated region
      $region9: #{tpu_custom_call.1} parent=5 // pred_check
        _
      $region10: #{tpu_custom_call.1} parent=5 // pred_check_branch
        %119 = sbr.rel (%p116) target = $region12
      $region11: #{tpu_custom_call.1} parent=5 // pred_region
        %s120 = ssub.s32 %s12, 1
        // Predicated region
        $region13: #{tpu_custom_call.1} parent=11 // pred_check
          %p121 = pneg %p33
        $region14: #{tpu_custom_call.1} parent=11 // pred_check_branch
          %123 = sbr.rel (%p121) target = $region16
        $region15: #{tpu_custom_call.1} parent=11 // pred_region
          _
        $region16: #{tpu_custom_call.1} parent=11 // pred_fallthru
          _
        // Predicated region
        $region17: #{tpu_custom_call.1} parent=11 // pred_check
          %p124 = pneg %p80
        $region18: #{tpu_custom_call.1} parent=11 // pred_check_branch
          %126 = sbr.rel (%p124) target = $region20
        $region19: #{tpu_custom_call.1} parent=11 // pred_region
          _
        $region20: #{tpu_custom_call.1} parent=11 // pred_fallthru
          _
      $region12: #{tpu_custom_call.1} parent=5 // pred_fallthru
        _
      %p127 = scmp.lt.s32.totalorder %s12, 2
      // Predicated region
      $region21: #{tpu_custom_call.1} parent=5 // pred_check
        %p128 = pneg %p127
      $region22: #{tpu_custom_call.1} parent=5 // pred_check_branch
        %130 = sbr.rel (%p128) target = $region24
      $region23: #{tpu_custom_call.1} parent=5 // pred_region
        // Predicated region
        $region25: #{tpu_custom_call.1} parent=23 // pred_check
          %p131 = pneg %p53
        $region26: #{tpu_custom_call.1} parent=23 // pred_check_branch
          %133 = sbr.rel (%p131) target = $region28
        $region27: #{tpu_custom_call.1} parent=23 // pred_region
          %p134 = scmp.lt.s32.totalorder %s12, 1
          %s135 = scalar_select %p134, %s12, 1
          %s136 = smul.addr %s135, 8
          %s137 = scalar_lea.vmem %s1, %s136
        $region28: #{tpu_custom_call.1} parent=23 // pred_fallthru
          _
      $region24: #{tpu_custom_call.1} parent=5 // pred_fallthru
        _
      %p138 = scmp.le.s32.totalorder 1, %s12
      %p139 = scmp.lt.s32.totalorder %s12, 3
      %p140 = pnand %p138, %p139
      %p141 = pneg %p140
      // Predicated region
      $region29: #{tpu_custom_call.1} parent=5 // pred_check
        _
      $region30: #{tpu_custom_call.1} parent=5 // pred_check_branch
        %143 = sbr.rel (%p140) target = $region32
      $region31: #{tpu_custom_call.1} parent=5 // pred_region
        %s144 = ssub.s32 %s12, 1
        %p145 = pneg %p33
        %p146 = pneg %p30
        %p147 = scmp.lt.s32.totalorder %s17, 1
        %s148 = scalar_select %p147, %s17, 1
        %s149 = smul.addr %s148, 8
        %s150 = scalar_lea.vmem %s1, %s149
        %p151 = pneg %p59
        %p152 = pneg %p56
        %p153 = pneg %p80
        %p154 = pneg %p77
        %p155 = pneg %p106
        %p156 = pneg %p103
        %s157 = sand.u32 %s93, 1
        %s158 = scalar_lea.sflag [#allocation3], %s157
        %s159 = sand.u32 %s93, 1
        %s160 = smul.addr %s159, 32
        %s161 = scalar_lea.vmem [#allocation2], %s160
        %p162 = scmp.lt.s32.totalorder %s17, 1
        %s163 = scalar_select %p162, %s17, 1
        %s164 = smul.addr %s163, 8
        %s165 = scalar_lea.vmem %s1, %s164
        %v166 = vld [vmem:[%s165] sm:$0xff]
        %v167 = vld [vmem:[%s2] sm:$0xff]
        %vm168 = vcmask 64512
        %v170 = vsel %vm168, %v166, 0
        %172 = vmatprep.subr.mxu0 0.0
        %173 = vmatpush1.msra.mxu0 %v167
        %174 = vmatprep.subr.mxu0 0.0
        %175 = vmatpush1.msra.mxu0 0.0
        %176 = vmatprep.subr.mxu0 0.0
        %177 = vmatpush1.msra.mxu0 0.0
        %178 = vmatprep.subr.mxu0 0.0
        %179 = vmatpush1.msra.mxu0 0.0
        %180 = vmatprep.subr.mxu0 0.0
        %181 = vmatpush1.msra.mxu0 0.0
        %182 = vmatprep.subr.mxu0 0.0
        %183 = vmatpush1.msra.mxu0 0.0
        %184 = vmatprep.subr.mxu0 0.0
        %185 = vmatpush1.msra.mxu0 0.0
        %186 = vmatprep.subr.mxu0 0.0
        %187 = vmatpush1.msra.mxu0 0.0
        %188 = vmatprep.subr.mxu0 0.0
        %189 = vmatpush1.msra.mxu0 0.0
        %190 = vmatprep.subr.mxu0 0.0
        %191 = vmatpush1.msra.mxu0 0.0
        %192 = vmatprep.subr.mxu0 0.0
        %193 = vmatpush1.msra.mxu0 0.0
        %194 = vmatprep.subr.mxu0 0.0
        %195 = vmatpush1.msra.mxu0 0.0
        %196 = vmatprep.subr.mxu0 0.0
        %197 = vmatpush1.msra.mxu0 0.0
        %198 = vmatprep.subr.mxu0 0.0
        %199 = vmatpush1.msra.mxu0 0.0
        %200 = vmatprep.subr.mxu0 0.0
        %201 = vmatpush1.msra.mxu0 0.0
        %202 = vmatprep.subr.mxu0 0.0
        %203 = vmatpush1.msra.mxu0 0.0
        %204 = vmatprep.subr.mxu0 0.0
        %205 = vmatpush1.msra.mxu0 0.0
        %206 = vmatprep.subr.mxu0 0.0
        %207 = vmatpush1.msra.mxu0 0.0
        %208 = vmatprep.subr.mxu0 0.0
        %209 = vmatpush1.msra.mxu0 0.0
        %210 = vmatprep.subr.mxu0 0.0
        %211 = vmatpush1.msra.mxu0 0.0
        %212 = vmatprep.subr.mxu0 0.0
        %213 = vmatpush1.msra.mxu0 0.0
        %214 = vmatprep.subr.mxu0 0.0
        %215 = vmatpush1.msra.mxu0 0.0
        %216 = vmatprep.subr.mxu0 0.0
        %217 = vmatpush1.msra.mxu0 0.0
        %218 = vmatprep.subr.mxu0 0.0
        %219 = vmatpush1.msra.mxu0 0.0
        %220 = vmatprep.subr.mxu0 0.0
        %221 = vmatpush1.msra.mxu0 0.0
        %222 = vmatprep.subr.mxu0 0.0
        %223 = vmatpush1.msra.mxu0 0.0
        %224 = vmatprep.subr.mxu0 0.0
        %225 = vmatpush1.msra.mxu0 0.0
        %226 = vmatprep.subr.mxu0 0.0
        %227 = vmatpush1.msra.mxu0 0.0
        %228 = vmatprep.subr.mxu0 0.0
        %229 = vmatpush1.msra.mxu0 0.0
        %230 = vmatprep.subr.mxu0 0.0
        %231 = vmatpush1.msra.mxu0 0.0
        %232 = vmatprep.subr.mxu0 0.0
        %233 = vmatpush1.msra.mxu0 0.0
        %234 = vmatprep.subr.mxu0 0.0
        %235 = vmatpush1.msra.mxu0 0.0
        %236 = vmatprep.mubr.f32.mxu0 0.0
        %237 = vmatmul.mubr.f32.gmra.mrb[0].mxu0 %v170
        %v238 = vpop.f32.mrb[0].mxu0
        %v239 = vadd.f32 0.0, %v238
        %v240 = vpop.f32.mrb[0].mxu0
        %241 = vdwg.mxu0
        %v242 = vld [vmem:[%s0] sm:$0xff]
        %v243 = vld [vmem:[%s0 + $0x8] sm:$0xff]
        %v244 = vld [vmem:[%s0 + $0x10] sm:$0xff]
        %v245 = vld [vmem:[%s0 + $0x18] sm:$0xff]
        %v247 = vsel %vm168, %v242, 0
        %v250 = vsel %vm168, %v243, 0
        %v253 = vsel %vm168, %v244, 0
        %v256 = vsel %vm168, %v245, 0
        %258 = vmatprep.subr.mxu0 0.0
        %259 = vmatpush1.msra.mxu0 %v239
        %260 = vmatprep.subr.mxu0 0.0
        %261 = vmatpush1.msra.mxu0 0.0
        %262 = vmatprep.subr.mxu0 0.0
        %263 = vmatpush1.msra.mxu0 0.0
        %264 = vmatprep.subr.mxu0 0.0
        %265 = vmatpush1.msra.mxu0 0.0
        %266 = vmatprep.subr.mxu0 0.0
        %267 = vmatpush1.msra.mxu0 0.0
        %268 = vmatprep.subr.mxu0 0.0
        %269 = vmatpush1.msra.mxu0 0.0
        %270 = vmatprep.subr.mxu0 0.0
        %271 = vmatpush1.msra.mxu0 0.0
        %272 = vmatprep.subr.mxu0 0.0
        %273 = vmatpush1.msra.mxu0 0.0
        %274 = vmatprep.subr.mxu0 0.0
        %275 = vmatpush1.msra.mxu0 0.0
        %276 = vmatprep.subr.mxu0 0.0
        %277 = vmatpush1.msra.mxu0 0.0
        %278 = vmatprep.subr.mxu0 0.0
        %279 = vmatpush1.msra.mxu0 0.0
        %280 = vmatprep.subr.mxu0 0.0
        %281 = vmatpush1.msra.mxu0 0.0
        %282 = vmatprep.subr.mxu0 0.0
        %283 = vmatpush1.msra.mxu0 0.0
        %284 = vmatprep.subr.mxu0 0.0
        %285 = vmatpush1.msra.mxu0 0.0
        %286 = vmatprep.subr.mxu0 0.0
        %287 = vmatpush1.msra.mxu0 0.0
        %288 = vmatprep.subr.mxu0 0.0
        %289 = vmatpush1.msra.mxu0 0.0
        %290 = vmatprep.subr.mxu0 0.0
        %291 = vmatpush1.msra.mxu0 0.0
        %292 = vmatprep.subr.mxu0 0.0
        %293 = vmatpush1.msra.mxu0 0.0
        %294 = vmatprep.subr.mxu0 0.0
        %295 = vmatpush1.msra.mxu0 0.0
        %296 = vmatprep.subr.mxu0 0.0
        %297 = vmatpush1.msra.mxu0 0.0
        %298 = vmatprep.subr.mxu0 0.0
        %299 = vmatpush1.msra.mxu0 0.0
        %300 = vmatprep.subr.mxu0 0.0
        %301 = vmatpush1.msra.mxu0 0.0
        %302 = vmatprep.subr.mxu0 0.0
        %303 = vmatpush1.msra.mxu0 0.0
        %304 = vmatprep.subr.mxu0 0.0
        %305 = vmatpush1.msra.mxu0 0.0
        %306 = vmatprep.subr.mxu0 0.0
        %307 = vmatpush1.msra.mxu0 0.0
        %308 = vmatprep.subr.mxu0 0.0
        %309 = vmatpush1.msra.mxu0 0.0
        %310 = vmatprep.subr.mxu0 0.0
        %311 = vmatpush1.msra.mxu0 0.0
        %312 = vmatprep.subr.mxu0 0.0
        %313 = vmatpush1.msra.mxu0 0.0
        %314 = vmatprep.subr.mxu0 0.0
        %315 = vmatpush1.msra.mxu0 0.0
        %316 = vmatprep.subr.mxu0 0.0
        %317 = vmatpush1.msra.mxu0 0.0
        %318 = vmatprep.subr.mxu0 0.0
        %319 = vmatpush1.msra.mxu0 0.0
        %320 = vmatprep.subr.mxu0 0.0
        %321 = vmatpush1.msra.mxu0 0.0
        %322 = vmatprep.mubr.f32.mxu0 0.0
        %323 = vmatmul.mubr.f32.gmra.mrb[0].mxu0 %v247
        %v324 = vpop.f32.mrb[0].mxu0
        %v325 = vadd.f32 0.0, %v324
        %v326 = vpop.f32.mrb[0].mxu0
        %327 = vmatprep.mubr.f32.mxu0 0.0
        %328 = vmatmul.mubr.f32.gmra.mrb[0].mxu0 %v250
        %v329 = vpop.f32.mrb[0].mxu0
        %v330 = vadd.f32 0.0, %v329
        %v331 = vpop.f32.mrb[0].mxu0
        %332 = vmatprep.mubr.f32.mxu0 0.0
        %333 = vmatmul.mubr.f32.gmra.mrb[0].mxu0 %v253
        %v334 = vpop.f32.mrb[0].mxu0
        %v335 = vadd.f32 0.0, %v334
        %v336 = vpop.f32.mrb[0].mxu0
        %337 = vmatprep.mubr.f32.mxu0 0.0
        %338 = vmatmul.mubr.f32.gmra.mrb[0].mxu0 %v256
        %v339 = vpop.f32.mrb[0].mxu0
        %v340 = vadd.f32 0.0, %v339
        %v341 = vpop.f32.mrb[0].mxu0
        %342 = vdwg.mxu0
        %vm343 = vcmask 261120
        %344 = vst.msk [vmem:[%s161] sm:$0xff] %vm343, %v325
        %345 = vst.msk [vmem:[%s161 + $0x8] sm:$0xff] %vm343, %v330
        %346 = vst.msk [vmem:[%s161 + $0x10] sm:$0xff] %vm343, %v335
        %347 = vst.msk [vmem:[%s161 + $0x18] sm:$0xff] %vm343, %v340
        %s348 = sand.u32 %s93, 1
        %s349 = scalar_lea.sflag [#allocation3], %s348
        %s350 = sand.u32 %s93, 1
        %s351 = smul.addr %s350, 32
        %s352 = scalar_lea.vmem [#allocation2], %s351
        // Predicated region
        $region33: #{tpu_custom_call.1} parent=31 // pred_check
          %p353 = pneg %p103
        $region34: #{tpu_custom_call.1} parent=31 // pred_check_branch
          %355 = sbr.rel (%p353) target = $region36
        $region35: #{tpu_custom_call.1} parent=31 // pred_region
          %s357 = ssub.s32 512, 512
          %358 = vsyncadd %s349, %s357
          %s359 = smul.addr %s17, 4
          %s360 = smul.addr %s359, 128
          %s361 = scalar_lea.hbm %s3, %s360
          %s362 = sshll.u32 %s352, 4
          %s363 = int_to_ptr.vmem [resolvable:$true] %s362
          %368 = dma.vmem_to_hbm [thread:$0]  %s363, 512, %s361, %s349, 128, 128, 8
        $region36: #{tpu_custom_call.1} parent=31 // pred_fallthru
          _
      $region32: #{tpu_custom_call.1} parent=5 // pred_fallthru
        _
      %p369 = scmp.le.s32.totalorder 2, %s12
      // Predicated region
      $region37: #{tpu_custom_call.1} parent=5 // pred_check
        %p370 = pneg %p369
      $region38: #{tpu_custom_call.1} parent=5 // pred_check_branch
        %372 = sbr.rel (%p370) target = $region40
      $region39: #{tpu_custom_call.1} parent=5 // pred_region
        %s373 = ssub.s32 %s12, 2
        // Predicated region
        $region41: #{tpu_custom_call.1} parent=39 // pred_check
          %p374 = pneg %p109
        $region42: #{tpu_custom_call.1} parent=39 // pred_check_branch
          %376 = sbr.rel (%p374) target = $region44
        $region43: #{tpu_custom_call.1} parent=39 // pred_region
          %s377 = sand.u32 %s94, 1
          %s378 = scalar_lea.sflag [#allocation3], %s377
          %s379 = sand.u32 %s94, 1
          %s380 = smul.addr %s379, 32
          %s381 = scalar_lea.vmem [#allocation2], %s380
          %382 = dma.done %s378, 512
        $region44: #{tpu_custom_call.1} parent=39 // pred_fallthru
          _
      $region40: #{tpu_custom_call.1} parent=5 // pred_fallthru
        _
    $region6: #{tpu_custom_call.1} parent=1 // loop_footer
      %s16 = sadd.s32 1, %s12
    $region7: #{tpu_custom_call.1} parent=1 // loop_footer_branch
      %11 = sbr.rel target = $region3
    $region8: #{tpu_custom_call.1} parent=1 // loop_exit
      _
    %383 = vsyncpa [#allocation3], 1
    %s384 = scalar_lea.sflag [#allocation3], 1
    %385 = vsyncpa %s384, 1

</llo_original>
